<compile_context>
chip_gen: v5e
topology: v5e:2x2
jax: 0.10.0
libtpu: 0.0.40
codegen_flags: <defaults>
</compile_context>

<pallas_src>
import jax
import jax.numpy as jnp
from jax.experimental import pallas as pl
from jax.experimental.pallas import tpu as pltpu

# N2F3 thresholds / levels (exactly the constants of the PyTorch module).
_P_T1 = 0.8114928305149078
_P_T2 = 0.5024898052215576
_P_T3 = 0.2826657369732857
_P_T4 = 0.0916687622666359
_P_L2 = 0.6229856610298157
_P_L3 = 0.3819939494132996
_P_L4 = 0.1833375245332718

_N_T1 = -0.1234657019376755
_N_T2 = -0.39097706973552704
_N_T3 = -0.7675113677978516
_N_L1 = -0.246931403875351
_N_L2 = -0.5350227355957031
_N_L3 = -1.0


def _make_kernel(k, group, compute_dtype):
    """Build the (row_tile, k*group)-block N2F3 kernel.

    k > 1 packs several quantization groups into one 128-lane row so the
    block / output last dim stays lane-dense when G < 128.
    """

    def kernel(x_ref, o_ref):
        x = x_ref[...]
        if x.dtype != compute_dtype:
            x = x.astype(compute_dtype)          # bf16 stays bf16 (native path)
        rt = x.shape[0]
        if k > 1:
            x = x.reshape(rt, k, group)

        # Per-group scales: lane-axis reduction (XLU slot).  The max/min is
        # exact in either dtype; all per-row follow-up math is done in f32 on
        # tiny (rt[,k],1) vectors.
        scale_pos = jnp.abs(jnp.max(x, axis=-1, keepdims=True)).astype(jnp.float32)
        scale_neg = jnp.abs(jnp.min(x, axis=-1, keepdims=True)).astype(jnp.float32)

        # Degenerate groups (max == 0 or min == 0) give 0/0 = NaN in the
        # reference.  Poison the eight per-row *levels* (cheap (rt,1) selects)
        # instead of doing a full-width select at the end.
        bad = (scale_pos == 0.0) | (scale_neg == 0.0)
        nan = jnp.float32(jnp.nan)
        cdt = compute_dtype

        # Fold the scales into thresholds / levels once per row:
        # x/s >= T  <=>  x >= s*T (s > 0); a bucket dequantizes to s*L, the
        # same product as the reference, so values match bit-for-bit.
        tp1 = (scale_pos * _P_T1).astype(cdt)
        tp2 = (scale_pos * _P_T2).astype(cdt)
        tp3 = (scale_pos * _P_T3).astype(cdt)
        tp4 = (scale_pos * _P_T4).astype(cdt)
        tn1 = (scale_neg * _N_T1).astype(cdt)
        tn2 = (scale_neg * _N_T2).astype(cdt)
        tn3 = (scale_neg * _N_T3).astype(cdt)

        lp1 = jnp.where(bad, nan, scale_pos).astype(cdt)
        lp2 = jnp.where(bad, nan, scale_pos * _P_L2).astype(cdt)
        lp3 = jnp.where(bad, nan, scale_pos * _P_L3).astype(cdt)
        lp4 = jnp.where(bad, nan, scale_pos * _P_L4).astype(cdt)
        lz = jnp.where(bad, nan, jnp.float32(0.0)).astype(cdt)
        ln1 = jnp.where(bad, nan, scale_neg * _N_L1).astype(cdt)
        ln2 = jnp.where(bad, nan, scale_neg * _N_L2).astype(cdt)
        ln3 = jnp.where(bad, nan, scale_neg * _N_L3).astype(cdt)

        # 7 compares + 7 selects per element; no divides, no pos/neg split,
        # no trailing full-width NaN select.
        out = jnp.where(x >= tp1, lp1,
              jnp.where(x >= tp2, lp2,
              jnp.where(x >= tp3, lp3,
              jnp.where(x >= tp4, lp4,
              jnp.where(x >= tn1, lz,
              jnp.where(x >= tn2, ln1,
              jnp.where(x >= tn3, ln2, ln3)))))))

        o_ref[...] = out.reshape(o_ref.shape).astype(o_ref.dtype)

    return kernel


def _ceil_div(a, b):
    return -(-a // b)


def _round_up(a, b):
    return _ceil_div(a, b) * b


def _choose_row_tile(rows, lane_width, itemsize, target_block_bytes=4 << 20):
    """Pick a row tile: big blocks (amortize ~0.35us per grid step), sublane
    aligned, and an even step count >= 4 on non-trivial inputs (pipelining and
    a balanced v7x 2-TensorCore split of the "parallel" grid axis)."""
    align = 8 * max(1, 4 // itemsize)            # 8 rows f32, 16 bf16, 32 int8
    row_bytes = lane_width * itemsize
    rt = max(align, (target_block_bytes // max(row_bytes, 1)) // align * align)

    total_bytes = rows * row_bytes
    min_steps = 4 if (total_bytes >= (2 << 20) and rows >= 4 * align) else 1
    if rt >= rows and min_steps == 1:
        return rows                              # single full-array block

    nsteps = max(min_steps, _ceil_div(rows, rt))
    if nsteps > 1 and nsteps % 2 and nsteps < 8:
        nsteps += 1                              # avoid a 2/1-style core split
    rt = max(align, _round_up(_ceil_div(rows, nsteps), align))
    return min(rt, rows)


def ste_n2f3_quantize(x, q_group_size=128, *, target_block_bytes=4 << 20):
    """Pallas TPU implementation of SteN2F3Quantizer.forward (forward only)."""
    # TODO(synk): the straight-through-estimator backward of round_pass is not
    # expressed here; this kernel implements the forward pass only.
    org_shape = x.shape
    if q_group_size > 0:
        assert org_shape[-1] % q_group_size == 0
        group = q_group_size
    elif q_group_size == -1:
        group = org_shape[-1]
    else:
        raise ValueError("q_group_size must be > 0 or -1")

    total_groups = x.size // group

    # Keep the block / output last dim lane-dense by packing several groups
    # per 128-lane row when the group size is small.
    k = 1
    if group < 128 and 128 % group == 0 and total_groups % (128 // group) == 0:
        k = 128 // group
    lane_width = k * group
    rows = total_groups // k

    qx = x.reshape(rows, lane_width)
    itemsize = jnp.dtype(x.dtype).itemsize
    row_tile = _choose_row_tile(rows, lane_width, itemsize, target_block_bytes)
    grid = (_ceil_div(rows, row_tile),)

    compute_dtype = jnp.bfloat16 if x.dtype == jnp.bfloat16 else jnp.float32
    compute_itemsize = jnp.dtype(compute_dtype).itemsize

    # VMEM: double-buffered in + out blocks, plus compute temps, plus slack.
    block_bytes = row_tile * lane_width * itemsize
    compute_bytes = row_tile * lane_width * compute_itemsize
    vmem_limit = int(min(max(32 << 20,
                             4 * block_bytes + 2 * compute_bytes + (4 << 20)),
                         64 << 20))

    elems = rows * lane_width
    cost = pl.CostEstimate(
        flops=16 * elems,
        transcendentals=0,
        bytes_accessed=2 * elems * itemsize,
    )

    out = pl.pallas_call(
        _make_kernel(k, group, compute_dtype),
        out_shape=jax.ShapeDtypeStruct((rows, lane_width), x.dtype),
        grid_spec=pltpu.PrefetchScalarGridSpec(
            num_scalar_prefetch=0,
            grid=grid,
            in_specs=[pl.BlockSpec((row_tile, lane_width), lambda i: (i, 0))],
            out_specs=pl.BlockSpec((row_tile, lane_width), lambda i: (i, 0)),
        ),
        compiler_params=pltpu.CompilerParams(
            dimension_semantics=("parallel",),
            vmem_limit_bytes=vmem_limit,
        ),
        cost_estimate=cost,
    )(qx)

    return out.reshape(org_shape)


def _reference(x, q_group_size=128):
    """Pure-JAX transliteration of the PyTorch forward (exact division +
    sequential where-chain)."""
    org_shape = x.shape
    g = q_group_size if q_group_size > 0 else org_shape[-1]
    qx = x.reshape(-1, g).astype(jnp.float32)
    max_val = jnp.max(qx, axis=1, keepdims=True)
    min_val = jnp.min(qx, axis=1, keepdims=True)
    scale_pos = jnp.abs(max_val)
    scale_neg = jnp.abs(min_val)
    x_pos = jnp.where(qx >= 0, qx, 0.0)
    x_neg = jnp.where(qx < 0, qx, 0.0)
    q_pos = x_pos / scale_pos
    q_neg = x_neg / scale_neg
    q_pos = jnp.where(q_pos >= _P_T1, 1.0, q_pos)
    q_pos = jnp.where((q_pos < _P_T1) & (q_pos >= _P_T2), _P_L2, q_pos)
    q_pos = jnp.where((q_pos < _P_T2) & (q_pos >= _P_T3), _P_L3, q_pos)
    q_pos = jnp.where((q_pos < _P_T3) & (q_pos >= _P_T4), _P_L4, q_pos)
    q_pos = jnp.where(q_pos < _P_T4, 0.0, q_pos)
    q_neg = jnp.where(q_neg >= _N_T1, 0.0, q_neg)
    q_neg = jnp.where((q_neg < _N_T1) & (q_neg >= _N_T2), _N_L1, q_neg)
    q_neg = jnp.where((q_neg < _N_T2) & (q_neg >= _N_T3), _N_L2, q_neg)
    q_neg = jnp.where(q_neg < _N_T3, _N_L3, q_neg)
    out = q_pos * scale_pos + q_neg * scale_neg
    return out.reshape(org_shape).astype(x.dtype)


def _check(y, y_ref, x, q_group_size, boundary_tol=1e-6, value_rtol=1e-6):
    """Strict check, except elements within `boundary_tol` of a bucket
    boundary (in normalized units) may legitimately land in the adjacent
    bucket, and NaN==NaN counts as a match (degenerate groups)."""
    g = q_group_size if q_group_size > 0 else x.shape[-1]
    yk = y.reshape(-1, g).astype(jnp.float32)
    yr = y_ref.reshape(-1, g).astype(jnp.float32)
    both_nan = jnp.isnan(yk) & jnp.isnan(yr)
    mism = ~(jnp.isclose(yk, yr, atol=1e-6, rtol=value_rtol) | both_nan)
    if not bool(mism.any()):
        return
    qx = x.reshape(-1, g).astype(jnp.float32)
    sp = jnp.abs(jnp.max(qx, axis=1, keepdims=True))
    sn = jnp.abs(jnp.min(qx, axis=1, keepdims=True))
    qn = jnp.where(qx >= 0, qx / sp, qx / sn)
    thr = jnp.array([_P_T1, _P_T2, _P_T3, _P_T4, _N_T1, _N_T2, _N_T3],
                    jnp.float32)
    near = (jnp.abs(qn[..., None] - thr) <= boundary_tol).any(-1)
    assert bool(jnp.all(~mism | near)), "kernel mismatch not at a bucket boundary"


if __name__ == "__main__":
    key = jax.random.PRNGKey(0)
    ks = jax.random.split(key, 6)

    # 1) Default config (G=128), f32, single full-array block.
    x1 = jax.random.normal(ks[0], (4, 8, 128), dtype=jnp.float32)
    y1 = jax.block_until_ready(ste_n2f3_quantize(x1, 128))
    assert y1.shape == x1.shape and y1.dtype == x1.dtype
    _check(y1, _reference(x1, 128), x1, 128)

    # 2) Multi-block grid with a non-divisible row count (edge writeback),
    #    forced by a tiny block budget.
    x2 = jax.random.normal(ks[1], (1, 100, 128), dtype=jnp.float32)
    y2 = jax.block_until_ready(
        ste_n2f3_quantize(x2, 128, target_block_bytes=16 * 1024))
    _check(y2, _reference(x2, 128), x2, 128)

    # 3) Medium input exercising the default >=4-step even grid.
    x3 = jax.random.normal(ks[2], (16, 256, 128), dtype=jnp.float32)
    y3 = jax.block_until_ready(ste_n2f3_quantize(x3, 128))
    _check(y3, _reference(x3, 128), x3, 128)

    # 4) Native bf16 compute path.
    x4 = jax.random.normal(ks[3], (4, 8, 128), dtype=jnp.bfloat16)
    y4 = jax.block_until_ready(ste_n2f3_quantize(x4, 128))
    assert y4.dtype == jnp.bfloat16
    _check(y4, _reference(x4, 128), x4, 128, boundary_tol=1e-2, value_rtol=1e-2)

    # 5) Small group size (G=64): two groups packed per 128-lane row.
    x5 = jax.random.normal(ks[4], (4, 8, 128), dtype=jnp.float32)
    y5 = jax.block_until_ready(ste_n2f3_quantize(x5, 64))
    _check(y5, _reference(x5, 64), x5, 64)

    # 6) q_group_size=-1 (whole last dim is a single group).
    x6 = jax.random.normal(ks[5], (2, 16, 256), dtype=jnp.float32)
    y6 = jax.block_until_ready(ste_n2f3_quantize(x6, -1))
    _check(y6, _reference(x6, -1), x6, -1)

    # 7) Degenerate groups (max == 0 / min == 0) reproduce the reference NaNs
    #    without contaminating neighbouring rows.
    xd = jax.random.normal(ks[0], (8, 128), dtype=jnp.float32)
    xd = xd.at[0].set(0.0)                                   # max == min == 0
    xd = xd.at[1].set(jnp.arange(128, dtype=jnp.float32))    # min == 0
    yd = jax.block_until_ready(ste_n2f3_quantize(xd, 128))
    assert bool(jnp.isnan(yd[0]).all()) and bool(jnp.isnan(yd[1]).all())
    _check(yd, _reference(xd, 128), xd, 128)

    print("KERNEL_OK")
</pallas_src>

<mosaic_0001>
module attributes {stable_mosaic.version = 11 : i64} {
  func.func @kernel(%arg0: i32, %arg1: memref<32x128xf32, #tpu.memory_space<vmem>>, %arg2: memref<32x128xf32, #tpu.memory_space<vmem>>) attributes {dimension_semantics = [#tpu.dimension_semantics<parallel>], iteration_bounds = array<i64: 1>, scalar_prefetch = 0 : i64, scratch_operands = 0 : i64, tpu.core_type = #tpu.core_type<tc>, window_params = [{transform_indices = @transform_0, window_bounds = array<i64: 32, 128>}, {transform_indices = @transform_1, window_bounds = array<i64: 32, 128>}]} {
    %c0 = arith.constant 0 : index
    %c0_0 = arith.constant 0 : index
    %0 = vector.load %arg1[%c0, %c0_0] : memref<32x128xf32, #tpu.memory_space<vmem>>, vector<32x128xf32>
    %cst = arith.constant dense<0xFF800000> : vector<32xf32>
    %1 = vector.multi_reduction <maximumf>, %0, %cst [1] : vector<32x128xf32> to vector<32xf32>
    %2 = vector.shape_cast %1 : vector<32xf32> to vector<32x1xf32>
    %3 = math.absf %2 : vector<32x1xf32>
    %cst_1 = arith.constant dense<0x7F800000> : vector<32xf32>
    %4 = vector.multi_reduction <minimumf>, %0, %cst_1 [1] : vector<32x128xf32> to vector<32xf32>
    %5 = vector.shape_cast %4 : vector<32xf32> to vector<32x1xf32>
    %6 = math.absf %5 : vector<32x1xf32>
    %cst_2 = arith.constant 0.000000e+00 : f32
    %7 = vector.broadcast %cst_2 : f32 to vector<32x1xf32>
    %8 = arith.cmpf oeq, %3, %7 : vector<32x1xf32>
    %cst_3 = arith.constant 0.000000e+00 : f32
    %9 = vector.broadcast %cst_3 : f32 to vector<32x1xf32>
    %10 = arith.cmpf oeq, %6, %9 : vector<32x1xf32>
    %11 = arith.ori %8, %10 : vector<32x1xi1>
    %cst_4 = arith.constant 0.8114928 : f32
    %12 = vector.broadcast %cst_4 : f32 to vector<32x1xf32>
    %13 = arith.mulf %3, %12 : vector<32x1xf32>
    %cst_5 = arith.constant 0.502489805 : f32
    %14 = vector.broadcast %cst_5 : f32 to vector<32x1xf32>
    %15 = arith.mulf %3, %14 : vector<32x1xf32>
    %cst_6 = arith.constant 0.28266573 : f32
    %16 = vector.broadcast %cst_6 : f32 to vector<32x1xf32>
    %17 = arith.mulf %3, %16 : vector<32x1xf32>
    %cst_7 = arith.constant 0.0916687622 : f32
    %18 = vector.broadcast %cst_7 : f32 to vector<32x1xf32>
    %19 = arith.mulf %3, %18 : vector<32x1xf32>
    %cst_8 = arith.constant -0.123465702 : f32
    %20 = vector.broadcast %cst_8 : f32 to vector<32x1xf32>
    %21 = arith.mulf %6, %20 : vector<32x1xf32>
    %cst_9 = arith.constant -0.390977085 : f32
    %22 = vector.broadcast %cst_9 : f32 to vector<32x1xf32>
    %23 = arith.mulf %6, %22 : vector<32x1xf32>
    %cst_10 = arith.constant -0.767511368 : f32
    %24 = vector.broadcast %cst_10 : f32 to vector<32x1xf32>
    %25 = arith.mulf %6, %24 : vector<32x1xf32>
    %cst_11 = arith.constant 0x7FC00000 : f32
    %26 = vector.broadcast %cst_11 : f32 to vector<32x1xf32>
    %27 = arith.select %11, %26, %3 : vector<32x1xi1>, vector<32x1xf32>
    %cst_12 = arith.constant 0.622985661 : f32
    %28 = vector.broadcast %cst_12 : f32 to vector<32x1xf32>
    %29 = arith.mulf %3, %28 : vector<32x1xf32>
    %cst_13 = arith.constant 0x7FC00000 : f32
    %30 = vector.broadcast %cst_13 : f32 to vector<32x1xf32>
    %31 = arith.select %11, %30, %29 : vector<32x1xi1>, vector<32x1xf32>
    %cst_14 = arith.constant 0.381993949 : f32
    %32 = vector.broadcast %cst_14 : f32 to vector<32x1xf32>
    %33 = arith.mulf %3, %32 : vector<32x1xf32>
    %cst_15 = arith.constant 0x7FC00000 : f32
    %34 = vector.broadcast %cst_15 : f32 to vector<32x1xf32>
    %35 = arith.select %11, %34, %33 : vector<32x1xi1>, vector<32x1xf32>
    %cst_16 = arith.constant 0.183337525 : f32
    %36 = vector.broadcast %cst_16 : f32 to vector<32x1xf32>
    %37 = arith.mulf %3, %36 : vector<32x1xf32>
    %cst_17 = arith.constant 0x7FC00000 : f32
    %38 = vector.broadcast %cst_17 : f32 to vector<32x1xf32>
    %39 = arith.select %11, %38, %37 : vector<32x1xi1>, vector<32x1xf32>
    %cst_18 = arith.constant 0x7FC00000 : f32
    %cst_19 = arith.constant 0.000000e+00 : f32
    %40 = vector.broadcast %cst_18 : f32 to vector<32x1xf32>
    %41 = vector.broadcast %cst_19 : f32 to vector<32x1xf32>
    %42 = arith.select %11, %40, %41 : vector<32x1xi1>, vector<32x1xf32>
    %cst_20 = arith.constant -0.246931404 : f32
    %43 = vector.broadcast %cst_20 : f32 to vector<32x1xf32>
    %44 = arith.mulf %6, %43 : vector<32x1xf32>
    %cst_21 = arith.constant 0x7FC00000 : f32
    %45 = vector.broadcast %cst_21 : f32 to vector<32x1xf32>
    %46 = arith.select %11, %45, %44 : vector<32x1xi1>, vector<32x1xf32>
    %cst_22 = arith.constant -0.535022736 : f32
    %47 = vector.broadcast %cst_22 : f32 to vector<32x1xf32>
    %48 = arith.mulf %6, %47 : vector<32x1xf32>
    %cst_23 = arith.constant 0x7FC00000 : f32
    %49 = vector.broadcast %cst_23 : f32 to vector<32x1xf32>
    %50 = arith.select %11, %49, %48 : vector<32x1xi1>, vector<32x1xf32>
    %cst_24 = arith.constant -1.000000e+00 : f32
    %51 = vector.broadcast %cst_24 : f32 to vector<32x1xf32>
    %52 = arith.mulf %6, %51 : vector<32x1xf32>
    %cst_25 = arith.constant 0x7FC00000 : f32
    %53 = vector.broadcast %cst_25 : f32 to vector<32x1xf32>
    %54 = arith.select %11, %53, %52 : vector<32x1xi1>, vector<32x1xf32>
    %55 = vector.broadcast %13 : vector<32x1xf32> to vector<32x128xf32>
    %56 = arith.cmpf oge, %0, %55 : vector<32x128xf32>
    %57 = vector.broadcast %15 : vector<32x1xf32> to vector<32x128xf32>
    %58 = arith.cmpf oge, %0, %57 : vector<32x128xf32>
    %59 = vector.broadcast %17 : vector<32x1xf32> to vector<32x128xf32>
    %60 = arith.cmpf oge, %0, %59 : vector<32x128xf32>
    %61 = vector.broadcast %19 : vector<32x1xf32> to vector<32x128xf32>
    %62 = arith.cmpf oge, %0, %61 : vector<32x128xf32>
    %63 = vector.broadcast %21 : vector<32x1xf32> to vector<32x128xf32>
    %64 = arith.cmpf oge, %0, %63 : vector<32x128xf32>
    %65 = vector.broadcast %23 : vector<32x1xf32> to vector<32x128xf32>
    %66 = arith.cmpf oge, %0, %65 : vector<32x128xf32>
    %67 = vector.broadcast %25 : vector<32x1xf32> to vector<32x128xf32>
    %68 = arith.cmpf oge, %0, %67 : vector<32x128xf32>
    %69 = vector.shape_cast %50 : vector<32x1xf32> to vector<32x1xf32>
    %70 = vector.broadcast %69 : vector<32x1xf32> to vector<32x128xf32>
    %71 = vector.shape_cast %54 : vector<32x1xf32> to vector<32x1xf32>
    %72 = vector.broadcast %71 : vector<32x1xf32> to vector<32x128xf32>
    %73 = arith.select %68, %70, %72 : vector<32x128xi1>, vector<32x128xf32>
    %74 = vector.shape_cast %46 : vector<32x1xf32> to vector<32x1xf32>
    %75 = vector.broadcast %74 : vector<32x1xf32> to vector<32x128xf32>
    %76 = arith.select %66, %75, %73 : vector<32x128xi1>, vector<32x128xf32>
    %77 = vector.shape_cast %42 : vector<32x1xf32> to vector<32x1xf32>
    %78 = vector.broadcast %77 : vector<32x1xf32> to vector<32x128xf32>
    %79 = arith.select %64, %78, %76 : vector<32x128xi1>, vector<32x128xf32>
    %80 = vector.shape_cast %39 : vector<32x1xf32> to vector<32x1xf32>
    %81 = vector.broadcast %80 : vector<32x1xf32> to vector<32x128xf32>
    %82 = arith.select %62, %81, %79 : vector<32x128xi1>, vector<32x128xf32>
    %83 = vector.shape_cast %35 : vector<32x1xf32> to vector<32x1xf32>
    %84 = vector.broadcast %83 : vector<32x1xf32> to vector<32x128xf32>
    %85 = arith.select %60, %84, %82 : vector<32x128xi1>, vector<32x128xf32>
    %86 = vector.shape_cast %31 : vector<32x1xf32> to vector<32x1xf32>
    %87 = vector.broadcast %86 : vector<32x1xf32> to vector<32x128xf32>
    %88 = arith.select %58, %87, %85 : vector<32x128xi1>, vector<32x128xf32>
    %89 = vector.shape_cast %27 : vector<32x1xf32> to vector<32x1xf32>
    %90 = vector.broadcast %89 : vector<32x1xf32> to vector<32x128xf32>
    %91 = arith.select %56, %90, %88 : vector<32x128xi1>, vector<32x128xf32>
    %c0_26 = arith.constant 0 : index
    %c0_27 = arith.constant 0 : index
    %92 = vector.load %arg2[%c0_26, %c0_27] : memref<32x128xf32, #tpu.memory_space<vmem>>, vector<32x128xf32>
    tpu.vector_store %arg2[%c0_26, %c0_27], %91 {strides = array<i32>} : memref<32x128xf32, #tpu.memory_space<vmem>>, vector<32x128xf32>,
    return
  }
  func.func @transform_0(%arg0: i32) -> (i32, i32) {
    %c0_i32 = arith.constant 0 : i32
    %c0_i32_0 = arith.constant 0 : i32
    return %arg0, %c0_i32 : i32, i32
  }
  func.func @transform_1(%arg0: i32) -> (i32, i32) {
    %c0_i32 = arith.constant 0 : i32
    %c0_i32_0 = arith.constant 0 : i32
    return %arg0, %c0_i32 : i32, i32
  }
}

</mosaic_0001>

<llo_original>
// kernel: tpu_custom_call.1
$region0: #{tpu_custom_call.1}
  #allocation0 [shape = 'u32[]', space=smem, size = 0x4, offset = 0x4, fixed_abs, tag = 'smem constant byte address 0x4 - core index']
  #allocation1 [shape = 'u32[72,128]{1,0:T(1,128)}', space=vmem, size = 0x9000, scoped, tag = 'internal scratch']
  %s0 = inlined_call_operand.hbm [shape: f32[32,128], index: 0, kind: input, shape index: {}]
  %s1 = inlined_call_operand.hbm [shape: f32[32,128], index: 1, kind: output, shape index: {}]
  %s2 = sld [smem:[#allocation0]]
  $region18: #{tpu_custom_call.1} parent=0
    _
  %s4 = ssub.s32 1, %s2
  %s5 = scalar_select 0, %s4, %s2
  $region1: #{tpu_custom_call.1} parent=0
    #allocation2 [shape = 'u8[16384]{0}', space=vmem, size = 0x4000, scoped, tag = 'input window, operand 0, single buffered']
    #allocation3 [shape = 's32[1]{0}', space=sflag, size = 0x4, scoped, tag = 'scoped memory for tpu_custom_call.1']
    #allocation4 [shape = 's32[1]{0}', space=sflag, size = 0x4, scoped, tag = 'scoped memory for tpu_custom_call.1']
    #allocation5 [shape = 'u8[16384]{0}', space=vmem, size = 0x4000, scoped, tag = 'output window, operand 0, single buffered']
    %6 = vsyncpa [#allocation3], 0
    %7 = vsyncpa [#allocation4], 0
    // Predicated region
    $region2: #{tpu_custom_call.1} parent=1 // pred_check
      _
    $region3: #{tpu_custom_call.1} parent=1 // pred_check_branch
      %9 = sbr.rel (0) target = $region5
    $region4: #{tpu_custom_call.1} parent=1 // pred_region
      %11 = vsyncadd [#allocation3], 0
      %s12 = sshll.u32 %s0, 4
      %s13 = int_to_ptr.hbm [resolvable:$true] %s12
      %s14 = sshll.u32 [#allocation2], 4
      %s15 = int_to_ptr.vmem [resolvable:$true] %s14
      %20 = dma.hbm_to_vmem [thread:$0]  %s13, 512, %s15, [#allocation3], 128, 128, 8
    $region5: #{tpu_custom_call.1} parent=1 // pred_fallthru
      _
    // Predicated region
    $region6: #{tpu_custom_call.1} parent=1 // pred_check
      _
    $region7: #{tpu_custom_call.1} parent=1 // pred_check_branch
      %22 = sbr.rel (0) target = $region9
    $region8: #{tpu_custom_call.1} parent=1 // pred_region
      %24 = dma.done [#allocation3], 512
    $region9: #{tpu_custom_call.1} parent=1 // pred_fallthru
      _
    %v25 = vld [vmem:[#allocation2] sm:$0xff]
    %v26 = vld [vmem:[#allocation2 + $0x8] sm:$0xff]
    %v27 = vld [vmem:[#allocation2 + $0x10] sm:$0xff]
    %v28 = vld [vmem:[#allocation2 + $0x18] sm:$0xff]
    %29 = vmax.xlane.f32.xlu0 %v25
    %v30 = vpop.xlane.xlu0 %29
    %31 = vmax.xlane.f32.xlu0 %v26
    %v32 = vpop.xlane.xlu0 %31
    %33 = vmax.xlane.f32.xlu0 %v27
    %v34 = vpop.xlane.xlu0 %33
    %35 = vmax.xlane.f32.xlu0 %v28
    %v36 = vpop.xlane.xlu0 %35
    %v37 = vand.u32 2147483647, %v30
    %v38 = vand.u32 2147483647, %v32
    %v39 = vand.u32 2147483647, %v34
    %v40 = vand.u32 2147483647, %v36
    %41 = vmin.xlane.f32.xlu0 %v25
    %v42 = vpop.xlane.xlu0 %41
    %43 = vmin.xlane.f32.xlu0 %v26
    %v44 = vpop.xlane.xlu0 %43
    %45 = vmin.xlane.f32.xlu0 %v27
    %v46 = vpop.xlane.xlu0 %45
    %47 = vmin.xlane.f32.xlu0 %v28
    %v48 = vpop.xlane.xlu0 %47
    %v49 = vand.u32 2147483647, %v42
    %v50 = vand.u32 2147483647, %v44
    %v51 = vand.u32 2147483647, %v46
    %v52 = vand.u32 2147483647, %v48
    %vm53 = vcmp.eq.f32.partialorder %v37, 0.0
    %vm54 = vcmp.eq.f32.partialorder %v38, 0.0
    %vm55 = vcmp.eq.f32.partialorder %v39, 0.0
    %vm56 = vcmp.eq.f32.partialorder %v40, 0.0
    %vm57 = vcmp.eq.f32.partialorder %v49, 0.0
    %vm58 = vcmp.eq.f32.partialorder %v50, 0.0
    %vm59 = vcmp.eq.f32.partialorder %v51, 0.0
    %vm60 = vcmp.eq.f32.partialorder %v52, 0.0
    %vm61 = vmor %vm53, %vm57
    %vm62 = vmor %vm54, %vm58
    %vm63 = vmor %vm55, %vm59
    %vm64 = vmor %vm56, %vm60
    %v65 = vmul.f32 %v37, 0.8114928
    %v66 = vmul.f32 %v38, 0.8114928
    %v67 = vmul.f32 %v39, 0.8114928
    %v68 = vmul.f32 %v40, 0.8114928
    %v69 = vmul.f32 %v37, 0.5024898
    %v70 = vmul.f32 %v38, 0.5024898
    %v71 = vmul.f32 %v39, 0.5024898
    %v72 = vmul.f32 %v40, 0.5024898
    %v73 = vmul.f32 %v37, 0.28266573
    %v74 = vmul.f32 %v38, 0.28266573
    %v75 = vmul.f32 %v39, 0.28266573
    %v76 = vmul.f32 %v40, 0.28266573
    %v77 = vmul.f32 %v37, 0.09166876
    %v78 = vmul.f32 %v38, 0.09166876
    %v79 = vmul.f32 %v39, 0.09166876
    %v80 = vmul.f32 %v40, 0.09166876
    %v81 = vmul.f32 %v49, -0.1234657
    %v82 = vmul.f32 %v50, -0.1234657
    %v83 = vmul.f32 %v51, -0.1234657
    %v84 = vmul.f32 %v52, -0.1234657
    %v85 = vmul.f32 %v49, -0.39097708
    %v86 = vmul.f32 %v50, -0.39097708
    %v87 = vmul.f32 %v51, -0.39097708
    %v88 = vmul.f32 %v52, -0.39097708
    %v89 = vmul.f32 %v49, -0.76751137
    %v90 = vmul.f32 %v50, -0.76751137
    %v91 = vmul.f32 %v51, -0.76751137
    %v92 = vmul.f32 %v52, -0.76751137
    %v93 = vsel %vm61, nan, %v37
    %v94 = vsel %vm62, nan, %v38
    %v95 = vsel %vm63, nan, %v39
    %v96 = vsel %vm64, nan, %v40
    %v97 = vmul.f32 %v37, 0.62298566
    %v98 = vmul.f32 %v38, 0.62298566
    %v99 = vmul.f32 %v39, 0.62298566
    %v100 = vmul.f32 %v40, 0.62298566
    %v101 = vsel %vm61, nan, %v97
    %v102 = vsel %vm62, nan, %v98
    %v103 = vsel %vm63, nan, %v99
    %v104 = vsel %vm64, nan, %v100
    %v105 = vmul.f32 %v37, 0.38199395
    %v106 = vmul.f32 %v38, 0.38199395
    %v107 = vmul.f32 %v39, 0.38199395
    %v108 = vmul.f32 %v40, 0.38199395
    %v109 = vsel %vm61, nan, %v105
    %v110 = vsel %vm62, nan, %v106
    %v111 = vsel %vm63, nan, %v107
    %v112 = vsel %vm64, nan, %v108
    %v113 = vmul.f32 %v37, 0.18333752
    %v114 = vmul.f32 %v38, 0.18333752
    %v115 = vmul.f32 %v39, 0.18333752
    %v116 = vmul.f32 %v40, 0.18333752
    %v117 = vsel %vm61, nan, %v113
    %v118 = vsel %vm62, nan, %v114
    %v119 = vsel %vm63, nan, %v115
    %v120 = vsel %vm64, nan, %v116
    %v121 = vsel %vm61, nan, 0.0
    %v122 = vsel %vm62, nan, 0.0
    %v123 = vsel %vm63, nan, 0.0
    %v124 = vsel %vm64, nan, 0.0
    %v125 = vmul.f32 %v49, -0.2469314
    %v126 = vmul.f32 %v50, -0.2469314
    %v127 = vmul.f32 %v51, -0.2469314
    %v128 = vmul.f32 %v52, -0.2469314
    %v129 = vsel %vm61, nan, %v125
    %v130 = vsel %vm62, nan, %v126
    %v131 = vsel %vm63, nan, %v127
    %v132 = vsel %vm64, nan, %v128
    %v133 = vmul.f32 %v49, -0.53502274
    %v134 = vmul.f32 %v50, -0.53502274
    %v135 = vmul.f32 %v51, -0.53502274
    %v136 = vmul.f32 %v52, -0.53502274
    %v137 = vsel %vm61, nan, %v133
    %v138 = vsel %vm62, nan, %v134
    %v139 = vsel %vm63, nan, %v135
    %v140 = vsel %vm64, nan, %v136
    %v141 = vmul.f32 %v49, -1.0
    %v142 = vmul.f32 %v50, -1.0
    %v143 = vmul.f32 %v51, -1.0
    %v144 = vmul.f32 %v52, -1.0
    %v145 = vsel %vm61, nan, %v141
    %v146 = vsel %vm62, nan, %v142
    %v147 = vsel %vm63, nan, %v143
    %v148 = vsel %vm64, nan, %v144
    %vm149 = vcmp.ge.f32.partialorder %v25, %v65
    %vm150 = vcmp.ge.f32.partialorder %v26, %v66
    %vm151 = vcmp.ge.f32.partialorder %v27, %v67
    %vm152 = vcmp.ge.f32.partialorder %v28, %v68
    %vm153 = vcmp.ge.f32.partialorder %v25, %v69
    %vm154 = vcmp.ge.f32.partialorder %v26, %v70
    %vm155 = vcmp.ge.f32.partialorder %v27, %v71
    %vm156 = vcmp.ge.f32.partialorder %v28, %v72
    %vm157 = vcmp.ge.f32.partialorder %v25, %v73
    %vm158 = vcmp.ge.f32.partialorder %v26, %v74
    %vm159 = vcmp.ge.f32.partialorder %v27, %v75
    %vm160 = vcmp.ge.f32.partialorder %v28, %v76
    %vm161 = vcmp.ge.f32.partialorder %v25, %v77
    %vm162 = vcmp.ge.f32.partialorder %v26, %v78
    %vm163 = vcmp.ge.f32.partialorder %v27, %v79
    %vm164 = vcmp.ge.f32.partialorder %v28, %v80
    %vm165 = vcmp.ge.f32.partialorder %v25, %v81
    %vm166 = vcmp.ge.f32.partialorder %v26, %v82
    %vm167 = vcmp.ge.f32.partialorder %v27, %v83
    %vm168 = vcmp.ge.f32.partialorder %v28, %v84
    %vm169 = vcmp.ge.f32.partialorder %v25, %v85
    %vm170 = vcmp.ge.f32.partialorder %v26, %v86
    %vm171 = vcmp.ge.f32.partialorder %v27, %v87
    %vm172 = vcmp.ge.f32.partialorder %v28, %v88
    %vm173 = vcmp.ge.f32.partialorder %v25, %v89
    %vm174 = vcmp.ge.f32.partialorder %v26, %v90
    %vm175 = vcmp.ge.f32.partialorder %v27, %v91
    %vm176 = vcmp.ge.f32.partialorder %v28, %v92
    %v177 = vsel %vm173, %v137, %v145
    %v178 = vsel %vm174, %v138, %v146
    %v179 = vsel %vm175, %v139, %v147
    %v180 = vsel %vm176, %v140, %v148
    %v181 = vsel %vm169, %v129, %v177
    %v182 = vsel %vm170, %v130, %v178
    %v183 = vsel %vm171, %v131, %v179
    %v184 = vsel %vm172, %v132, %v180
    %v185 = vsel %vm165, %v121, %v181
    %v186 = vsel %vm166, %v122, %v182
    %v187 = vsel %vm167, %v123, %v183
    %v188 = vsel %vm168, %v124, %v184
    %v189 = vsel %vm161, %v117, %v185
    %v190 = vsel %vm162, %v118, %v186
    %v191 = vsel %vm163, %v119, %v187
    %v192 = vsel %vm164, %v120, %v188
    %v193 = vsel %vm157, %v109, %v189
    %v194 = vsel %vm158, %v110, %v190
    %v195 = vsel %vm159, %v111, %v191
    %v196 = vsel %vm160, %v112, %v192
    %v197 = vsel %vm153, %v101, %v193
    %v198 = vsel %vm154, %v102, %v194
    %v199 = vsel %vm155, %v103, %v195
    %v200 = vsel %vm156, %v104, %v196
    %v201 = vsel %vm149, %v93, %v197
    %v202 = vsel %vm150, %v94, %v198
    %v203 = vsel %vm151, %v95, %v199
    %v204 = vsel %vm152, %v96, %v200
    %205 = vst [vmem:[#allocation5] sm:$0xff] %v201
    %206 = vst [vmem:[#allocation5 + $0x8] sm:$0xff] %v202
    %207 = vst [vmem:[#allocation5 + $0x10] sm:$0xff] %v203
    %208 = vst [vmem:[#allocation5 + $0x18] sm:$0xff] %v204
    // Predicated region
    $region10: #{tpu_custom_call.1} parent=1 // pred_check
      _
    $region11: #{tpu_custom_call.1} parent=1 // pred_check_branch
      %210 = sbr.rel (0) target = $region13
    $region12: #{tpu_custom_call.1} parent=1 // pred_region
      %212 = vsyncadd [#allocation4], 0
      %s213 = sshll.u32 [#allocation5], 4
      %s214 = int_to_ptr.vmem [resolvable:$true] %s213
      %s215 = sshll.u32 %s1, 4
      %s216 = int_to_ptr.hbm [resolvable:$true] %s215
      %221 = dma.vmem_to_hbm [thread:$0]  %s214, 512, %s216, [#allocation4], 128, 128, 8
    $region13: #{tpu_custom_call.1} parent=1 // pred_fallthru
      _
    // Predicated region
    $region14: #{tpu_custom_call.1} parent=1 // pred_check
      _
    $region15: #{tpu_custom_call.1} parent=1 // pred_check_branch
      %223 = sbr.rel (0) target = $region17
    $region16: #{tpu_custom_call.1} parent=1 // pred_region
      %225 = dma.done [#allocation4], 512
    $region17: #{tpu_custom_call.1} parent=1 // pred_fallthru
      _
    %226 = vsyncpa [#allocation3], 1
    %227 = vsyncpa [#allocation4], 1

</llo_original>
